<compile_context>
chip_gen: v6e
topology: v6e:2x2x1
jax: 0.10.0
libtpu: 0.0.40
codegen_flags: <defaults>
</compile_context>

<pallas_src>
import math

import jax
import jax.numpy as jnp
from jax.experimental import pallas as pl
from jax.experimental.pallas import tpu as pltpu

# TODO(synk): the reference reads cfg['network']['eval']['quat_thresh'] (degrees) from a
# global config that is not part of the module; we default it to 5 degrees here.
QUAT_THRESH_DEG = 5.0

_LANES = 128
_QUATS_PER_ROW = _LANES // 4
_EPS_TRACE = 1e-4   # clamp eps used by so3_rotation_angle
_EPS_NORM = 1e-12   # guard on |p|^2 / |g|^2 (reference is undefined for zero quats;
                    # also keeps zero-padding exactly at phi = -1 with a finite recip)


def _cdiv(a, b):
    return -(-a // b)


def _round_up(a, b):
    return _cdiv(a, b) * b


def _default_num_partials():
    # 2 partial sums (one per TensorCore) only on v7x; 1 on single-TC chips.
    try:
        kind = jax.devices()[0].device_kind.lower()
    except Exception:
        return 1
    return 2 if ("v7" in kind or "7x" in kind) else 1


def _make_quat_loss_kernel(tile_rows, cos_thresh):
    """QuatLoss reduction kernel on lane-interleaved (tile_rows, 128) quaternion tiles."""

    def kernel(ones4_ref, pred_ref, gt_ref, phi_out, sl1_out, cnt_out):
        t = pl.program_id(1)  # batch-tile reduction axis ("arbitrary")

        @pl.when(t == 0)
        def _init():
            phi_out[...] = jnp.zeros_like(phi_out)
            sl1_out[...] = jnp.zeros_like(sl1_out)
            cnt_out[...] = jnp.zeros_like(cnt_out)

        p = pred_ref[...].astype(jnp.float32)
        g = gt_ref[...].astype(jnp.float32)
        ones4 = ones4_ref[...]                    # (128,128) bf16 block-diag of 4x4 ones

        # ---- SmoothL1 (beta=1), purely elementwise; zero padding contributes 0. ----
        d = p - g
        ad = jnp.abs(d)
        sl1 = jnp.where(ad < 1.0, 0.5 * d * d, ad - 0.5)

        # ---- per-quaternion 4-lane sums on the (idle) MXU. ----
        # Exact to ~2^-17 via a 2-term hi/lo bf16 split (ones4 entries are exact in bf16
        # and the MXU accumulates in f32).
        def group_sum(x):
            hi = x.astype(jnp.bfloat16)
            lo = (x - hi.astype(jnp.float32)).astype(jnp.bfloat16)
            s = jnp.dot(hi, ones4, preferred_element_type=jnp.float32)
            return s + jnp.dot(lo, ones4, preferred_element_type=jnp.float32)

        dot = group_sum(p * g)                               # broadcast over 4 lanes/quat
        pp = jnp.maximum(group_sum(p * p), _EPS_NORM)
        gg = jnp.maximum(group_sum(g * g), _EPS_NORM)

        # quaternion_to_matrix is scale-invariant (two_s = 2/|q|^2), hence exactly
        #   trace(R(normalize(p)) @ R(g)^T) == 4 * (p.g)^2 / (|p|^2 * |g|^2) - 1.
        # Zero-padded quats: dot = 0 exactly -> trace = -1 -> phi = -1, hit = 0.
        trace = 4.0 * (dot * dot) * pl.reciprocal(pp * gg, approx=True) - 1.0
        trace = jnp.clip(trace, -1.0 - _EPS_TRACE, 3.0 + _EPS_TRACE)
        phi = 0.5 * (trace - 1.0)
        hit = jnp.where(phi > cos_thresh, 1.0, 0.0)

        # ---- vreg-shaped accumulation: (tile_rows,128) -> (8,128) via plain VPU adds. ----
        def row_sum(x):
            return jnp.sum(x.reshape(tile_rows // 8, 8, _LANES), axis=0)

        phi_out[...] += row_sum(phi)
        sl1_out[...] += row_sum(sl1)
        cnt_out[...] += row_sum(hit)

    return kernel


def quat_loss(pred_quat, gt_quat, *, quat_thresh_deg=QUAT_THRESH_DEG,
              tile_rows=4096, num_partials=None, core_parallel=False):
    """Pallas TPU forward of QuatLoss.

    pred_quat, gt_quat: (N, 4) arrays (f32 or bf16), same convention as PyTorch module.
    Returns (angle_loss + position_loss, quat_acc).
    """
    def _stream_dtype(x):
        x = jnp.asarray(x)
        return x if x.dtype == jnp.bfloat16 else x.astype(jnp.float32)

    pred = _stream_dtype(pred_quat)
    gt = _stream_dtype(gt_quat)
    n = int(pred.shape[0])

    if num_partials is None:
        num_partials = _default_num_partials()
    num_partials = max(1, int(num_partials))

    # ---- tiling: batch flattened to (total_rows, 128) lanes, 32 quats per row. ----
    rows_needed = _cdiv(max(n, 1), _QUATS_PER_ROW)
    tile_cap = _round_up(max(8, int(tile_rows)), 8)
    tile_rows_eff = min(tile_cap, _round_up(_cdiv(rows_needed, num_partials), 8))
    tiles_per_core = max(1, _cdiv(rows_needed, num_partials * tile_rows_eff))
    total_rows = num_partials * tiles_per_core * tile_rows_eff
    n_elems = n * 4
    pad_elems = total_rows * _LANES - n_elems

    def _prep(x):
        flat = x.reshape(n_elems)                    # free (contiguous, row-major)
        if pad_elems:
            flat = jnp.pad(flat, (0, pad_elems))     # zero pad: SL1=0, phi=-1, cnt=0
        return flat.reshape(total_rows, _LANES)      # free (contiguous, row-major)

    pred2d = _prep(pred)
    gt2d = _prep(gt)

    # Constant 128x128 block-diagonal ones matrix (4x4 blocks) used for the in-kernel
    # per-quaternion lane reductions; resident in VMEM (constant block index).
    lane = jnp.arange(_LANES, dtype=jnp.int32)
    ones4 = ((lane[:, None] // 4) == (lane[None, :] // 4)).astype(jnp.bfloat16)

    cos_thresh = math.cos(math.radians(quat_thresh_deg))
    kernel = _make_quat_loss_kernel(tile_rows_eff, cos_thresh)

    in_idx = lambda c, t: (c * tiles_per_core + t, 0)
    acc_shape = jax.ShapeDtypeStruct((num_partials, 8, _LANES), jnp.float32)
    acc_spec = pl.BlockSpec((None, 8, _LANES), lambda c, t: (c, 0, 0))
    lead_sem = pltpu.CORE_PARALLEL if core_parallel else "parallel"

    phi_p, sl1_p, cnt_p = pl.pallas_call(
        kernel,
        grid=(num_partials, tiles_per_core),
        in_specs=[
            pl.BlockSpec((_LANES, _LANES), lambda c, t: (0, 0)),        # resident const
            pl.BlockSpec((tile_rows_eff, _LANES), in_idx),
            pl.BlockSpec((tile_rows_eff, _LANES), in_idx),
        ],
        out_specs=(acc_spec, acc_spec, acc_spec),
        out_shape=(acc_shape, acc_shape, acc_shape),
        compiler_params=pltpu.CompilerParams(
            dimension_semantics=(lead_sem, "arbitrary"),
            vmem_limit_bytes=32 * 1024 * 1024),
    )(ones4, pred2d, gt2d)

    pad_quats = total_rows * _QUATS_PER_ROW - n
    # Each quaternion's phi / hit value is replicated over its 4 lanes -> scale by 1/4.
    sum_phi = 0.25 * jnp.sum(phi_p) + pad_quats   # padded quats contribute exactly -1 each
    count = 0.25 * jnp.sum(cnt_p)                 # padded quats contribute exactly 0
    sum_sl1 = jnp.sum(sl1_p)                      # padded elements contribute exactly 0

    position_loss = sum_sl1 / (4.0 * n)           # SmoothL1 'mean' over N*4 elements
    angle_loss = -sum_phi / n
    quat_acc = count / n
    return angle_loss + position_loss, quat_acc


if __name__ == "__main__":
    key = jax.random.PRNGKey(0)
    k1, k2 = jax.random.split(key)
    N = 8
    pred_quat = jax.random.normal(k1, (N, 4), jnp.float32)
    gt_quat = jax.random.normal(k2, (N, 4), jnp.float32)
    gt_quat = gt_quat / jnp.linalg.norm(gt_quat, axis=1, keepdims=True)

    total_loss, quat_acc = jax.jit(quat_loss)(pred_quat, gt_quat)
    jax.block_until_ready((total_loss, quat_acc))
    print("KERNEL_OK")
</pallas_src>

<mosaic_0001>
module attributes {stable_mosaic.version = 11 : i64} {
  func.func @kernel(%arg0: i32, %arg1: i32, %arg2: memref<128x128xbf16, #tpu.memory_space<vmem>>, %arg3: memref<8x128xf32, #tpu.memory_space<vmem>>, %arg4: memref<8x128xf32, #tpu.memory_space<vmem>>, %arg5: memref<1x8x128xf32, #tpu.memory_space<vmem>>, %arg6: memref<1x8x128xf32, #tpu.memory_space<vmem>>, %arg7: memref<1x8x128xf32, #tpu.memory_space<vmem>>) attributes {dimension_semantics = [#tpu.dimension_semantics<parallel>, #tpu.dimension_semantics<arbitrary>], iteration_bounds = array<i64: 1, 1>, scalar_prefetch = 0 : i64, scratch_operands = 0 : i64, tpu.core_type = #tpu.core_type<tc>, window_params = [{pipeline_mode = #tpu.pipeline_mode<synchronous>, transform_indices = @transform_0, window_bounds = array<i64: 128, 128>}, {transform_indices = @transform_1, window_bounds = array<i64: 8, 128>}, {transform_indices = @transform_2, window_bounds = array<i64: 8, 128>}, {transform_indices = @transform_3, window_bounds = array<i64: 1, 8, 128>}, {transform_indices = @transform_4, window_bounds = array<i64: 1, 8, 128>}, {transform_indices = @transform_5, window_bounds = array<i64: 1, 8, 128>}]} {
    %c0_i32 = arith.constant 0 : i32
    %0 = arith.cmpi eq, %arg1, %c0_i32 : i32
    %1 = arith.extui %0 : i1 to i32
    %c0_i32_0 = arith.constant 0 : i32
    %2 = arith.cmpi ne, %1, %c0_i32_0 : i32
    scf.if %2 {
      %cst_46 = arith.constant 0.000000e+00 : f32
      %89 = vector.broadcast %cst_46 : f32 to vector<8x128xf32>
      %c0_47 = arith.constant 0 : index
      %c0_48 = arith.constant 0 : index
      %c0_49 = arith.constant 0 : index
      %90 = vector.load %arg5[%c0_47, %c0_48, %c0_49] : memref<1x8x128xf32, #tpu.memory_space<vmem>>, vector<1x8x128xf32>
      %91 = vector.shape_cast %90 : vector<1x8x128xf32> to vector<8x128xf32>
      %92 = vector.shape_cast %89 : vector<8x128xf32> to vector<1x8x128xf32>
      tpu.vector_store %arg5[%c0_47, %c0_48, %c0_49], %92 {strides = array<i32>} : memref<1x8x128xf32, #tpu.memory_space<vmem>>, vector<1x8x128xf32>,
      %cst_50 = arith.constant 0.000000e+00 : f32
      %93 = vector.broadcast %cst_50 : f32 to vector<8x128xf32>
      %c0_51 = arith.constant 0 : index
      %c0_52 = arith.constant 0 : index
      %c0_53 = arith.constant 0 : index
      %94 = vector.load %arg6[%c0_51, %c0_52, %c0_53] : memref<1x8x128xf32, #tpu.memory_space<vmem>>, vector<1x8x128xf32>
      %95 = vector.shape_cast %94 : vector<1x8x128xf32> to vector<8x128xf32>
      %96 = vector.shape_cast %93 : vector<8x128xf32> to vector<1x8x128xf32>
      tpu.vector_store %arg6[%c0_51, %c0_52, %c0_53], %96 {strides = array<i32>} : memref<1x8x128xf32, #tpu.memory_space<vmem>>, vector<1x8x128xf32>,
      %cst_54 = arith.constant 0.000000e+00 : f32
      %97 = vector.broadcast %cst_54 : f32 to vector<8x128xf32>
      %c0_55 = arith.constant 0 : index
      %c0_56 = arith.constant 0 : index
      %c0_57 = arith.constant 0 : index
      %98 = vector.load %arg7[%c0_55, %c0_56, %c0_57] : memref<1x8x128xf32, #tpu.memory_space<vmem>>, vector<1x8x128xf32>
      %99 = vector.shape_cast %98 : vector<1x8x128xf32> to vector<8x128xf32>
      %100 = vector.shape_cast %97 : vector<8x128xf32> to vector<1x8x128xf32>
      tpu.vector_store %arg7[%c0_55, %c0_56, %c0_57], %100 {strides = array<i32>} : memref<1x8x128xf32, #tpu.memory_space<vmem>>, vector<1x8x128xf32>,
    } else {
    }
    %c0 = arith.constant 0 : index
    %c0_1 = arith.constant 0 : index
    %3 = vector.load %arg3[%c0, %c0_1] : memref<8x128xf32, #tpu.memory_space<vmem>>, vector<8x128xf32>
    %c0_2 = arith.constant 0 : index
    %c0_3 = arith.constant 0 : index
    %4 = vector.load %arg4[%c0_2, %c0_3] : memref<8x128xf32, #tpu.memory_space<vmem>>, vector<8x128xf32>
    %c0_4 = arith.constant 0 : index
    %c0_5 = arith.constant 0 : index
    %5 = vector.load %arg2[%c0_4, %c0_5] : memref<128x128xbf16, #tpu.memory_space<vmem>>, vector<128x128xbf16>
    %6 = arith.subf %3, %4 : vector<8x128xf32>
    %7 = math.absf %6 : vector<8x128xf32>
    %cst = arith.constant 1.000000e+00 : f32
    %8 = vector.broadcast %cst : f32 to vector<8x128xf32>
    %9 = arith.cmpf olt, %7, %8 : vector<8x128xf32>
    %cst_6 = arith.constant 5.000000e-01 : f32
    %10 = vector.broadcast %cst_6 : f32 to vector<8x128xf32>
    %11 = arith.mulf %10, %6 : vector<8x128xf32>
    %12 = arith.mulf %11, %6 : vector<8x128xf32>
    %cst_7 = arith.constant 5.000000e-01 : f32
    %13 = vector.broadcast %cst_7 : f32 to vector<8x128xf32>
    %14 = arith.subf %7, %13 : vector<8x128xf32>
    %15 = arith.select %9, %12, %14 : vector<8x128xi1>, vector<8x128xf32>
    %16 = arith.mulf %3, %4 : vector<8x128xf32>
    %17 = arith.truncf %16 : vector<8x128xf32> to vector<8x128xbf16>
    %18 = arith.extf %17 : vector<8x128xbf16> to vector<8x128xf32>
    %19 = arith.subf %16, %18 : vector<8x128xf32>
    %20 = arith.truncf %19 : vector<8x128xf32> to vector<8x128xbf16>
    %cst_8 = arith.constant dense<0.000000e+00> : vector<8x128xf32>
    %21 = tpu.matmul %17, %5, %cst_8 {dimension_numbers = #tpu.dot_dimension_numbers<[1], [0], [0], [1], [0, 0, 1, 1], [], []>} : vector<8x128xbf16>, vector<128x128xbf16>, vector<8x128xf32> -> vector<8x128xf32>
    %cst_9 = arith.constant dense<0.000000e+00> : vector<8x128xf32>
    %22 = tpu.matmul %20, %5, %cst_9 {dimension_numbers = #tpu.dot_dimension_numbers<[1], [0], [0], [1], [0, 0, 1, 1], [], []>} : vector<8x128xbf16>, vector<128x128xbf16>, vector<8x128xf32> -> vector<8x128xf32>
    %23 = arith.addf %21, %22 : vector<8x128xf32>
    %24 = arith.mulf %3, %3 : vector<8x128xf32>
    %25 = arith.truncf %24 : vector<8x128xf32> to vector<8x128xbf16>
    %26 = arith.extf %25 : vector<8x128xbf16> to vector<8x128xf32>
    %27 = arith.subf %24, %26 : vector<8x128xf32>
    %28 = arith.truncf %27 : vector<8x128xf32> to vector<8x128xbf16>
    %cst_10 = arith.constant dense<0.000000e+00> : vector<8x128xf32>
    %29 = tpu.matmul %25, %5, %cst_10 {dimension_numbers = #tpu.dot_dimension_numbers<[1], [0], [0], [1], [0, 0, 1, 1], [], []>} : vector<8x128xbf16>, vector<128x128xbf16>, vector<8x128xf32> -> vector<8x128xf32>
    %cst_11 = arith.constant dense<0.000000e+00> : vector<8x128xf32>
    %30 = tpu.matmul %28, %5, %cst_11 {dimension_numbers = #tpu.dot_dimension_numbers<[1], [0], [0], [1], [0, 0, 1, 1], [], []>} : vector<8x128xbf16>, vector<128x128xbf16>, vector<8x128xf32> -> vector<8x128xf32>
    %31 = arith.addf %29, %30 : vector<8x128xf32>
    %cst_12 = arith.constant 9.99999996E-13 : f32
    %32 = vector.broadcast %cst_12 : f32 to vector<8x128xf32>
    %33 = arith.maximumf %31, %32 : vector<8x128xf32>
    %34 = arith.mulf %4, %4 : vector<8x128xf32>
    %35 = arith.truncf %34 : vector<8x128xf32> to vector<8x128xbf16>
    %36 = arith.extf %35 : vector<8x128xbf16> to vector<8x128xf32>
    %37 = arith.subf %34, %36 : vector<8x128xf32>
    %38 = arith.truncf %37 : vector<8x128xf32> to vector<8x128xbf16>
    %cst_13 = arith.constant dense<0.000000e+00> : vector<8x128xf32>
    %39 = tpu.matmul %35, %5, %cst_13 {dimension_numbers = #tpu.dot_dimension_numbers<[1], [0], [0], [1], [0, 0, 1, 1], [], []>} : vector<8x128xbf16>, vector<128x128xbf16>, vector<8x128xf32> -> vector<8x128xf32>
    %cst_14 = arith.constant dense<0.000000e+00> : vector<8x128xf32>
    %40 = tpu.matmul %38, %5, %cst_14 {dimension_numbers = #tpu.dot_dimension_numbers<[1], [0], [0], [1], [0, 0, 1, 1], [], []>} : vector<8x128xbf16>, vector<128x128xbf16>, vector<8x128xf32> -> vector<8x128xf32>
    %41 = arith.addf %39, %40 : vector<8x128xf32>
    %cst_15 = arith.constant 9.99999996E-13 : f32
    %42 = vector.broadcast %cst_15 : f32 to vector<8x128xf32>
    %43 = arith.maximumf %41, %42 : vector<8x128xf32>
    %44 = arith.mulf %23, %23 : vector<8x128xf32>
    %cst_16 = arith.constant 4.000000e+00 : f32
    %45 = vector.broadcast %cst_16 : f32 to vector<8x128xf32>
    %46 = arith.mulf %45, %44 : vector<8x128xf32>
    %47 = arith.mulf %33, %43 : vector<8x128xf32>
    %48 = tpu.reciprocal %47 {approx = true} : vector<8x128xf32> -> vector<8x128xf32>
    %49 = arith.mulf %46, %48 : vector<8x128xf32>
    %cst_17 = arith.constant 1.000000e+00 : f32
    %50 = vector.broadcast %cst_17 : f32 to vector<8x128xf32>
    %51 = arith.subf %49, %50 : vector<8x128xf32>
    %cst_18 = arith.constant -1.000100e+00 : f32
    %cst_19 = arith.constant 3.000100e+00 : f32
    %52 = vector.broadcast %cst_18 : f32 to vector<8x128xf32>
    %53 = arith.maximumf %52, %51 : vector<8x128xf32>
    %54 = vector.broadcast %cst_19 : f32 to vector<8x128xf32>
    %55 = arith.minimumf %54, %53 : vector<8x128xf32>
    %cst_20 = arith.constant 1.000000e+00 : f32
    %56 = vector.broadcast %cst_20 : f32 to vector<8x128xf32>
    %57 = arith.subf %55, %56 : vector<8x128xf32>
    %cst_21 = arith.constant 5.000000e-01 : f32
    %58 = vector.broadcast %cst_21 : f32 to vector<8x128xf32>
    %59 = arith.mulf %58, %57 : vector<8x128xf32>
    %cst_22 = arith.constant 0.99619472 : f32
    %60 = vector.broadcast %cst_22 : f32 to vector<8x128xf32>
    %61 = arith.cmpf ogt, %59, %60 : vector<8x128xf32>
    %cst_23 = arith.constant 1.000000e+00 : f32
    %cst_24 = arith.constant 0.000000e+00 : f32
    %62 = vector.broadcast %cst_23 : f32 to vector<8x128xf32>
    %63 = vector.broadcast %cst_24 : f32 to vector<8x128xf32>
    %64 = arith.select %61, %62, %63 : vector<8x128xi1>, vector<8x128xf32>
    %c0_25 = arith.constant 0 : index
    %c0_26 = arith.constant 0 : index
    %c0_27 = arith.constant 0 : index
    %65 = vector.load %arg5[%c0_25, %c0_26, %c0_27] : memref<1x8x128xf32, #tpu.memory_space<vmem>>, vector<1x8x128xf32>
    %66 = vector.shape_cast %65 : vector<1x8x128xf32> to vector<8x128xf32>
    %67 = vector.shape_cast %59 : vector<8x128xf32> to vector<1x8x128xf32>
    %cst_28 = arith.constant dense<0.000000e+00> : vector<8x128xf32>
    %68 = vector.multi_reduction <add>, %67, %cst_28 [0] : vector<1x8x128xf32> to vector<8x128xf32>
    %69 = arith.addf %66, %68 : vector<8x128xf32>
    %c0_29 = arith.constant 0 : index
    %c0_30 = arith.constant 0 : index
    %c0_31 = arith.constant 0 : index
    %70 = vector.load %arg5[%c0_29, %c0_30, %c0_31] : memref<1x8x128xf32, #tpu.memory_space<vmem>>, vector<1x8x128xf32>
    %71 = vector.shape_cast %70 : vector<1x8x128xf32> to vector<8x128xf32>
    %72 = vector.shape_cast %69 : vector<8x128xf32> to vector<1x8x128xf32>
    tpu.vector_store %arg5[%c0_29, %c0_30, %c0_31], %72 {strides = array<i32>} : memref<1x8x128xf32, #tpu.memory_space<vmem>>, vector<1x8x128xf32>,
    %c0_32 = arith.constant 0 : index
    %c0_33 = arith.constant 0 : index
    %c0_34 = arith.constant 0 : index
    %73 = vector.load %arg6[%c0_32, %c0_33, %c0_34] : memref<1x8x128xf32, #tpu.memory_space<vmem>>, vector<1x8x128xf32>
    %74 = vector.shape_cast %73 : vector<1x8x128xf32> to vector<8x128xf32>
    %75 = vector.shape_cast %15 : vector<8x128xf32> to vector<1x8x128xf32>
    %cst_35 = arith.constant dense<0.000000e+00> : vector<8x128xf32>
    %76 = vector.multi_reduction <add>, %75, %cst_35 [0] : vector<1x8x128xf32> to vector<8x128xf32>
    %77 = arith.addf %74, %76 : vector<8x128xf32>
    %c0_36 = arith.constant 0 : index
    %c0_37 = arith.constant 0 : index
    %c0_38 = arith.constant 0 : index
    %78 = vector.load %arg6[%c0_36, %c0_37, %c0_38] : memref<1x8x128xf32, #tpu.memory_space<vmem>>, vector<1x8x128xf32>
    %79 = vector.shape_cast %78 : vector<1x8x128xf32> to vector<8x128xf32>
    %80 = vector.shape_cast %77 : vector<8x128xf32> to vector<1x8x128xf32>
    tpu.vector_store %arg6[%c0_36, %c0_37, %c0_38], %80 {strides = array<i32>} : memref<1x8x128xf32, #tpu.memory_space<vmem>>, vector<1x8x128xf32>,
    %c0_39 = arith.constant 0 : index
    %c0_40 = arith.constant 0 : index
    %c0_41 = arith.constant 0 : index
    %81 = vector.load %arg7[%c0_39, %c0_40, %c0_41] : memref<1x8x128xf32, #tpu.memory_space<vmem>>, vector<1x8x128xf32>
    %82 = vector.shape_cast %81 : vector<1x8x128xf32> to vector<8x128xf32>
    %83 = vector.shape_cast %64 : vector<8x128xf32> to vector<1x8x128xf32>
    %cst_42 = arith.constant dense<0.000000e+00> : vector<8x128xf32>
    %84 = vector.multi_reduction <add>, %83, %cst_42 [0] : vector<1x8x128xf32> to vector<8x128xf32>
    %85 = arith.addf %82, %84 : vector<8x128xf32>
    %c0_43 = arith.constant 0 : index
    %c0_44 = arith.constant 0 : index
    %c0_45 = arith.constant 0 : index
    %86 = vector.load %arg7[%c0_43, %c0_44, %c0_45] : memref<1x8x128xf32, #tpu.memory_space<vmem>>, vector<1x8x128xf32>
    %87 = vector.shape_cast %86 : vector<1x8x128xf32> to vector<8x128xf32>
    %88 = vector.shape_cast %85 : vector<8x128xf32> to vector<1x8x128xf32>
    tpu.vector_store %arg7[%c0_43, %c0_44, %c0_45], %88 {strides = array<i32>} : memref<1x8x128xf32, #tpu.memory_space<vmem>>, vector<1x8x128xf32>,
    return
  }
  func.func @transform_0(%arg0: i32, %arg1: i32) -> (i32, i32) {
    %c0_i32 = arith.constant 0 : i32
    %c0_i32_0 = arith.constant 0 : i32
    %c0_i32_1 = arith.constant 0 : i32
    return %c0_i32, %c0_i32_0 : i32, i32
  }
  func.func @transform_1(%arg0: i32, %arg1: i32) -> (i32, i32) {
    %c1_i32 = arith.constant 1 : i32
    %0 = arith.muli %arg0, %c1_i32 : i32
    %1 = arith.addi %0, %arg1 : i32
    %c0_i32 = arith.constant 0 : i32
    %c0_i32_0 = arith.constant 0 : i32
    return %1, %c0_i32 : i32, i32
  }
  func.func @transform_2(%arg0: i32, %arg1: i32) -> (i32, i32) {
    %c1_i32 = arith.constant 1 : i32
    %0 = arith.muli %arg0, %c1_i32 : i32
    %1 = arith.addi %0, %arg1 : i32
    %c0_i32 = arith.constant 0 : i32
    %c0_i32_0 = arith.constant 0 : i32
    return %1, %c0_i32 : i32, i32
  }
  func.func @transform_3(%arg0: i32, %arg1: i32) -> (i32, i32, i32) {
    %c0_i32 = arith.constant 0 : i32
    %c0_i32_0 = arith.constant 0 : i32
    %c0_i32_1 = arith.constant 0 : i32
    return %arg0, %c0_i32, %c0_i32_0 : i32, i32, i32
  }
  func.func @transform_4(%arg0: i32, %arg1: i32) -> (i32, i32, i32) {
    %c0_i32 = arith.constant 0 : i32
    %c0_i32_0 = arith.constant 0 : i32
    %c0_i32_1 = arith.constant 0 : i32
    return %arg0, %c0_i32, %c0_i32_0 : i32, i32, i32
  }
  func.func @transform_5(%arg0: i32, %arg1: i32) -> (i32, i32, i32) {
    %c0_i32 = arith.constant 0 : i32
    %c0_i32_0 = arith.constant 0 : i32
    %c0_i32_1 = arith.constant 0 : i32
    return %arg0, %c0_i32, %c0_i32_0 : i32, i32, i32
  }
}

</mosaic_0001>

<llo_original>
// kernel: quat_loss.1
$region0: #{quat_loss.1}
  #allocation0 [shape = 'u32[]', space=smem, size = 0x4, offset = 0x4, fixed_abs, tag = 'smem constant byte address 0x4 - core index']
  #allocation1 [shape = 'u32[144,128]{1,0:T(1,128)}', space=vmem, size = 0x12000, scoped, tag = 'internal scratch']
  %s0 = inlined_call_operand.vmem [shape: bf16[128,128], index: 0, kind: input, shape index: {}]
  %s1 = inlined_call_operand.vmem [shape: f32[8,128], index: 1, kind: input, shape index: {}]
  %s2 = inlined_call_operand.vmem [shape: f32[8,128], index: 2, kind: input, shape index: {}]
  %s3 = inlined_call_operand.vmem [shape: f32[1,8,128], index: 3, kind: output, shape index: {0}]
  %s4 = inlined_call_operand.vmem [shape: f32[1,8,128], index: 4, kind: output, shape index: {1}]
  %s5 = inlined_call_operand.vmem [shape: f32[1,8,128], index: 5, kind: output, shape index: {2}]
  %6 = xla_tuple %s3, %s4, %s5
  %s7 = sld [smem:[#allocation0]]
  $region42: #{quat_loss.1} parent=0
    _
  %s9 = ssub.s32 1, %s7
  %s10 = scalar_select 0, %s9, %s7
  // Predicated region
  $region2: #{quat_loss.1} parent=0 // pred_check
    _
  $region3: #{quat_loss.1} parent=0 // pred_check_branch
    %12 = sbr.rel (0) target = $region5
  $region4: #{quat_loss.1} parent=0 // pred_region
    _
  $region5: #{quat_loss.1} parent=0 // pred_fallthru
    _
  // Predicated region
  $region6: #{quat_loss.1} parent=0 // pred_check
    _
  $region7: #{quat_loss.1} parent=0 // pred_check_branch
    %14 = sbr.rel (0) target = $region9
  $region8: #{quat_loss.1} parent=0 // pred_region
    %s15 = sadd.s32 0, 0
    %p16 = scmp.lt.s32.totalorder %s15, 0
    %s17 = scalar_select %p16, %s15, 0
    %s18 = smul.addr %s17, 8
    %s19 = scalar_lea.vmem %s1, %s18
    %s20 = sadd.s32 0, 0
  $region9: #{quat_loss.1} parent=0 // pred_fallthru
    _
  // Predicated region
  $region10: #{quat_loss.1} parent=0 // pred_check
    _
  $region11: #{quat_loss.1} parent=0 // pred_check_branch
    %22 = sbr.rel (0) target = $region13
  $region12: #{quat_loss.1} parent=0 // pred_region
    %s23 = sadd.s32 0, 0
    %p24 = scmp.lt.s32.totalorder %s23, 0
    %s25 = scalar_select %p24, %s23, 0
    %s26 = smul.addr %s25, 8
    %s27 = scalar_lea.vmem %s2, %s26
    %s28 = sadd.s32 0, 0
  $region13: #{quat_loss.1} parent=0 // pred_fallthru
    _
  %s29 = sadd.s32 0, 0
  %p30 = scmp.lt.s32.totalorder %s29, 0
  %s31 = scalar_select %p30, %s29, 0
  %s32 = smul.addr %s31, 8
  %s33 = scalar_lea.vmem %s1, %s32
  %s34 = sadd.s32 0, 0
  %p35 = scmp.lt.s32.totalorder %s34, 0
  %s36 = scalar_select %p35, %s34, 0
  %s37 = smul.addr %s36, 8
  %s38 = scalar_lea.vmem %s2, %s37
  %s39 = sadd.s32 0, 0
  %p40 = scmp.lt.s32.totalorder %s39, 0
  %s41 = scalar_select %p40, %s39, 0
  %s42 = smul.addr %s41, 8
  %s43 = scalar_lea.vmem %s1, %s42
  %s44 = sadd.s32 0, 0
  %s45 = sadd.s32 0, 0
  %p46 = scmp.lt.s32.totalorder %s45, 0
  %s47 = scalar_select %p46, %s45, 0
  %s48 = smul.addr %s47, 8
  %s49 = scalar_lea.vmem %s2, %s48
  %s50 = sadd.s32 0, 0
  %p52 = scmp.eq.s32.totalorder 0, 0
  // Predicated region
  $region14: #{quat_loss.1} parent=0 // pred_check
    %p53 = pneg %p52
  $region15: #{quat_loss.1} parent=0 // pred_check_branch
    %55 = sbr.rel (%p53) target = $region17
  $region16: #{quat_loss.1} parent=0 // pred_region
    %56 = vst [vmem:[%s3] sm:$0xff] 0.0
    %57 = vst [vmem:[%s4] sm:$0xff] 0.0
    %58 = vst [vmem:[%s5] sm:$0xff] 0.0
  $region17: #{quat_loss.1} parent=0 // pred_fallthru
    _
  %v59 = vld [vmem:[%s43] sm:$0xff]
  %v60 = vld [vmem:[%s49] sm:$0xff]
  %v61 = vld [vmem:[%s0] sm:$0xf]
  %v62 = vld [vmem:[%s0 + $0x4] sm:$0xf]
  %v63 = vld [vmem:[%s0 + $0x8] sm:$0xf]
  %v64 = vld [vmem:[%s0 + $0xc] sm:$0xf]
  %v65 = vld [vmem:[%s0 + $0x10] sm:$0xf]
  %v66 = vld [vmem:[%s0 + $0x14] sm:$0xf]
  %v67 = vld [vmem:[%s0 + $0x18] sm:$0xf]
  %v68 = vld [vmem:[%s0 + $0x1c] sm:$0xf]
  %v69 = vld [vmem:[%s0 + $0x20] sm:$0xf]
  %v70 = vld [vmem:[%s0 + $0x24] sm:$0xf]
  %v71 = vld [vmem:[%s0 + $0x28] sm:$0xf]
  %v72 = vld [vmem:[%s0 + $0x2c] sm:$0xf]
  %v73 = vld [vmem:[%s0 + $0x30] sm:$0xf]
  %v74 = vld [vmem:[%s0 + $0x34] sm:$0xf]
  %v75 = vld [vmem:[%s0 + $0x38] sm:$0xf]
  %v76 = vld [vmem:[%s0 + $0x3c] sm:$0xf]
  %v77 = vsub.f32 %v59, %v60
  %v78 = vand.u32 2147483647, %v77
  %vm79 = vcmp.lt.f32.partialorder %v78, 1.0
  %v80 = vmul.f32 %v77, 0.5
  %v81 = vmul.f32 %v80, %v77
  %v82 = vsub.f32 %v78, 0.5
  %v83 = vsel %vm79, %v81, %v82
  %v84 = vmul.f32 %v59, %v60
  %v85 = vpack.c.bf16 %v84, %v84
  %v86 = vunpack.c.l.bf16 %v85
  %v87 = vsub.f32 %v84, %v86
  %v88 = vpack.c.bf16 %v87, %v87
  %v105 = vunpack.c.l.b16 %v61
  %v106 = vunpack.c.l.b16 %v62
  %v107 = vunpack.c.l.b16 %v63
  %v108 = vunpack.c.l.b16 %v64
  %v109 = vunpack.c.l.b16 %v65
  %v110 = vunpack.c.l.b16 %v66
  %v111 = vunpack.c.l.b16 %v67
  %v112 = vunpack.c.l.b16 %v68
  %v113 = vunpack.c.l.b16 %v69
  %v114 = vunpack.c.l.b16 %v70
  %v115 = vunpack.c.l.b16 %v71
  %v116 = vunpack.c.l.b16 %v72
  %v117 = vunpack.c.l.b16 %v73
  %v118 = vunpack.c.l.b16 %v74
  %v119 = vunpack.c.l.b16 %v75
  %v120 = vunpack.c.l.b16 %v76
  %v121 = vpack.c.b16 %v106, %v105
  %v122 = vpack.c.b16 %v108, %v107
  %v123 = vpack.c.b16 %v110, %v109
  %v124 = vpack.c.b16 %v112, %v111
  %v125 = vpack.c.b16 %v114, %v113
  %v126 = vpack.c.b16 %v116, %v115
  %v127 = vpack.c.b16 %v118, %v117
  %v128 = vpack.c.b16 %v120, %v119
  %137 = vmatprep.subr.bf16.mxu0 0
  %138 = vmatpush1.bf16.msra.mxu0 %v128
  %139 = vmatprep.subr.bf16.mxu0 0
  %140 = vmatpush1.bf16.msra.mxu0 %v127
  %141 = vmatprep.subr.bf16.mxu0 0
  %142 = vmatpush1.bf16.msra.mxu0 %v126
  %143 = vmatprep.subr.bf16.mxu0 0
  %144 = vmatpush1.bf16.msra.mxu0 %v125
  %145 = vmatprep.subr.bf16.mxu0 0
  %146 = vmatpush1.bf16.msra.mxu0 %v124
  %147 = vmatprep.subr.bf16.mxu0 0
  %148 = vmatpush1.bf16.msra.mxu0 %v123
  %149 = vmatprep.subr.bf16.mxu0 0
  %150 = vmatpush1.bf16.msra.mxu0 %v122
  %151 = vmatprep.subr.bf16.mxu0 0
  %152 = vmatpush1.bf16.msra.mxu0 %v121
  %153 = vmatprep.subr.bf16.mxu0 0
  %154 = vmatpush2.bf16.msra.mxu0 0
  %155 = vmatprep.subr.bf16.mxu0 0
  %156 = vmatpush2.bf16.msra.mxu0 0
  %157 = vmatprep.subr.bf16.mxu0 0
  %158 = vmatpush2.bf16.msra.mxu0 0
  %159 = vmatprep.subr.bf16.mxu0 0
  %160 = vmatpush2.bf16.msra.mxu0 0
  %161 = vmatprep.subr.bf16.mxu0 0
  %162 = vmatpush2.bf16.msra.mxu0 0
  %163 = vmatprep.subr.bf16.mxu0 0
  %164 = vmatpush2.bf16.msra.mxu0 0
  %165 = vmatprep.subr.bf16.mxu0 0
  %166 = vmatpush2.bf16.msra.mxu0 0
  %167 = vmatprep.subr.bf16.mxu0 0
  %168 = vmatpush2.bf16.msra.mxu0 0
  %169 = vmatprep.mubr.bf16.mxu0 0
  %170 = vmatmul.mubr.bf16.gmra.mxu0 %v88
  %v171 = vpop.f32.mrf.mxu0
  %v172 = vadd.f32 0.0, %v171
  %v173 = vpop.f32.mrf.mxu0
  %v174 = vpop.f32.mrf.mxu0
  %v175 = vpop.f32.mrf.mxu0
  %176 = vdwg.mxu0
  %177 = vmatprep.subr.bf16.mxu0 0
  %178 = vmatpush1.bf16.msra.mxu0 %v128
  %179 = vmatprep.subr.bf16.mxu0 0
  %180 = vmatpush1.bf16.msra.mxu0 %v127
  %181 = vmatprep.subr.bf16.mxu0 0
  %182 = vmatpush1.bf16.msra.mxu0 %v126
  %183 = vmatprep.subr.bf16.mxu0 0
  %184 = vmatpush1.bf16.msra.mxu0 %v125
  %185 = vmatprep.subr.bf16.mxu0 0
  %186 = vmatpush1.bf16.msra.mxu0 %v124
  %187 = vmatprep.subr.bf16.mxu0 0
  %188 = vmatpush1.bf16.msra.mxu0 %v123
  %189 = vmatprep.subr.bf16.mxu0 0
  %190 = vmatpush1.bf16.msra.mxu0 %v122
  %191 = vmatprep.subr.bf16.mxu0 0
  %192 = vmatpush1.bf16.msra.mxu0 %v121
  %193 = vmatprep.subr.bf16.mxu0 0
  %194 = vmatpush2.bf16.msra.mxu0 0
  %195 = vmatprep.subr.bf16.mxu0 0
  %196 = vmatpush2.bf16.msra.mxu0 0
  %197 = vmatprep.subr.bf16.mxu0 0
  %198 = vmatpush2.bf16.msra.mxu0 0
  %199 = vmatprep.subr.bf16.mxu0 0
  %200 = vmatpush2.bf16.msra.mxu0 0
  %201 = vmatprep.subr.bf16.mxu0 0
  %202 = vmatpush2.bf16.msra.mxu0 0
  %203 = vmatprep.subr.bf16.mxu0 0
  %204 = vmatpush2.bf16.msra.mxu0 0
  %205 = vmatprep.subr.bf16.mxu0 0
  %206 = vmatpush2.bf16.msra.mxu0 0
  %207 = vmatprep.subr.bf16.mxu0 0
  %208 = vmatpush2.bf16.msra.mxu0 0
  %209 = vmatprep.mubr.bf16.mxu0 0
  %210 = vmatmul.mubr.bf16.gmra.mxu0 %v85
  %v211 = vpop.f32.mrf.mxu0
  %v212 = vadd.f32 %v172, %v211
  %v213 = vpop.f32.mrf.mxu0
  %v214 = vpop.f32.mrf.mxu0
  %v215 = vpop.f32.mrf.mxu0
  %216 = vdwg.mxu0
  %v217 = vmul.f32 %v59, %v59
  %v218 = vpack.c.bf16 %v217, %v217
  %v219 = vunpack.c.l.bf16 %v218
  %v220 = vsub.f32 %v217, %v219
  %v221 = vpack.c.bf16 %v220, %v220
  %222 = vmatprep.subr.bf16.mxu0 0
  %223 = vmatpush1.bf16.msra.mxu0 %v128
  %224 = vmatprep.subr.bf16.mxu0 0
  %225 = vmatpush1.bf16.msra.mxu0 %v127
  %226 = vmatprep.subr.bf16.mxu0 0
  %227 = vmatpush1.bf16.msra.mxu0 %v126
  %228 = vmatprep.subr.bf16.mxu0 0
  %229 = vmatpush1.bf16.msra.mxu0 %v125
  %230 = vmatprep.subr.bf16.mxu0 0
  %231 = vmatpush1.bf16.msra.mxu0 %v124
  %232 = vmatprep.subr.bf16.mxu0 0
  %233 = vmatpush1.bf16.msra.mxu0 %v123
  %234 = vmatprep.subr.bf16.mxu0 0
  %235 = vmatpush1.bf16.msra.mxu0 %v122
  %236 = vmatprep.subr.bf16.mxu0 0
  %237 = vmatpush1.bf16.msra.mxu0 %v121
  %238 = vmatprep.subr.bf16.mxu0 0
  %239 = vmatpush2.bf16.msra.mxu0 0
  %240 = vmatprep.subr.bf16.mxu0 0
  %241 = vmatpush2.bf16.msra.mxu0 0
  %242 = vmatprep.subr.bf16.mxu0 0
  %243 = vmatpush2.bf16.msra.mxu0 0
  %244 = vmatprep.subr.bf16.mxu0 0
  %245 = vmatpush2.bf16.msra.mxu0 0
  %246 = vmatprep.subr.bf16.mxu0 0
  %247 = vmatpush2.bf16.msra.mxu0 0
  %248 = vmatprep.subr.bf16.mxu0 0
  %249 = vmatpush2.bf16.msra.mxu0 0
  %250 = vmatprep.subr.bf16.mxu0 0
  %251 = vmatpush2.bf16.msra.mxu0 0
  %252 = vmatprep.subr.bf16.mxu0 0
  %253 = vmatpush2.bf16.msra.mxu0 0
  %254 = vmatprep.mubr.bf16.mxu0 0
  %255 = vmatmul.mubr.bf16.gmra.mxu0 %v221
  %v256 = vpop.f32.mrf.mxu0
  %v257 = vadd.f32 0.0, %v256
  %v258 = vpop.f32.mrf.mxu0
  %v259 = vpop.f32.mrf.mxu0
  %v260 = vpop.f32.mrf.mxu0
  %261 = vdwg.mxu0
  %262 = vmatprep.subr.bf16.mxu0 0
  %263 = vmatpush1.bf16.msra.mxu0 %v128
  %264 = vmatprep.subr.bf16.mxu0 0
  %265 = vmatpush1.bf16.msra.mxu0 %v127
  %266 = vmatprep.subr.bf16.mxu0 0
  %267 = vmatpush1.bf16.msra.mxu0 %v126
  %268 = vmatprep.subr.bf16.mxu0 0
  %269 = vmatpush1.bf16.msra.mxu0 %v125
  %270 = vmatprep.subr.bf16.mxu0 0
  %271 = vmatpush1.bf16.msra.mxu0 %v124
  %272 = vmatprep.subr.bf16.mxu0 0
  %273 = vmatpush1.bf16.msra.mxu0 %v123
  %274 = vmatprep.subr.bf16.mxu0 0
  %275 = vmatpush1.bf16.msra.mxu0 %v122
  %276 = vmatprep.subr.bf16.mxu0 0
  %277 = vmatpush1.bf16.msra.mxu0 %v121
  %278 = vmatprep.subr.bf16.mxu0 0
  %279 = vmatpush2.bf16.msra.mxu0 0
  %280 = vmatprep.subr.bf16.mxu0 0
  %281 = vmatpush2.bf16.msra.mxu0 0
  %282 = vmatprep.subr.bf16.mxu0 0
  %283 = vmatpush2.bf16.msra.mxu0 0
  %284 = vmatprep.subr.bf16.mxu0 0
  %285 = vmatpush2.bf16.msra.mxu0 0
  %286 = vmatprep.subr.bf16.mxu0 0
  %287 = vmatpush2.bf16.msra.mxu0 0
  %288 = vmatprep.subr.bf16.mxu0 0
  %289 = vmatpush2.bf16.msra.mxu0 0
  %290 = vmatprep.subr.bf16.mxu0 0
  %291 = vmatpush2.bf16.msra.mxu0 0
  %292 = vmatprep.subr.bf16.mxu0 0
  %293 = vmatpush2.bf16.msra.mxu0 0
  %294 = vmatprep.mubr.bf16.mxu0 0
  %295 = vmatmul.mubr.bf16.gmra.mxu0 %v218
  %v296 = vpop.f32.mrf.mxu0
  %v297 = vadd.f32 %v257, %v296
  %v298 = vpop.f32.mrf.mxu0
  %v299 = vpop.f32.mrf.mxu0
  %v300 = vpop.f32.mrf.mxu0
  %301 = vdwg.mxu0
  %v302 = vmax.f32 %v297, 1e-12
  %v303 = vmul.f32 %v60, %v60
  %v304 = vpack.c.bf16 %v303, %v303
  %v305 = vunpack.c.l.bf16 %v304
  %v306 = vsub.f32 %v303, %v305
  %v307 = vpack.c.bf16 %v306, %v306
  %308 = vmatprep.subr.bf16.mxu0 0
  %309 = vmatpush1.bf16.msra.mxu0 %v128
  %310 = vmatprep.subr.bf16.mxu0 0
  %311 = vmatpush1.bf16.msra.mxu0 %v127
  %312 = vmatprep.subr.bf16.mxu0 0
  %313 = vmatpush1.bf16.msra.mxu0 %v126
  %314 = vmatprep.subr.bf16.mxu0 0
  %315 = vmatpush1.bf16.msra.mxu0 %v125
  %316 = vmatprep.subr.bf16.mxu0 0
  %317 = vmatpush1.bf16.msra.mxu0 %v124
  %318 = vmatprep.subr.bf16.mxu0 0
  %319 = vmatpush1.bf16.msra.mxu0 %v123
  %320 = vmatprep.subr.bf16.mxu0 0
  %321 = vmatpush1.bf16.msra.mxu0 %v122
  %322 = vmatprep.subr.bf16.mxu0 0
  %323 = vmatpush1.bf16.msra.mxu0 %v121
  %324 = vmatprep.subr.bf16.mxu0 0
  %325 = vmatpush2.bf16.msra.mxu0 0
  %326 = vmatprep.subr.bf16.mxu0 0
  %327 = vmatpush2.bf16.msra.mxu0 0
  %328 = vmatprep.subr.bf16.mxu0 0
  %329 = vmatpush2.bf16.msra.mxu0 0
  %330 = vmatprep.subr.bf16.mxu0 0
  %331 = vmatpush2.bf16.msra.mxu0 0
  %332 = vmatprep.subr.bf16.mxu0 0
  %333 = vmatpush2.bf16.msra.mxu0 0
  %334 = vmatprep.subr.bf16.mxu0 0
  %335 = vmatpush2.bf16.msra.mxu0 0
  %336 = vmatprep.subr.bf16.mxu0 0
  %337 = vmatpush2.bf16.msra.mxu0 0
  %338 = vmatprep.subr.bf16.mxu0 0
  %339 = vmatpush2.bf16.msra.mxu0 0
  %340 = vmatprep.mubr.bf16.mxu0 0
  %341 = vmatmul.mubr.bf16.gmra.mxu0 %v307
  %v342 = vpop.f32.mrf.mxu0
  %v343 = vadd.f32 0.0, %v342
  %v344 = vpop.f32.mrf.mxu0
  %v345 = vpop.f32.mrf.mxu0
  %v346 = vpop.f32.mrf.mxu0
  %347 = vdwg.mxu0
  %348 = vmatprep.subr.bf16.mxu0 0
  %349 = vmatpush1.bf16.msra.mxu0 %v128
  %350 = vmatprep.subr.bf16.mxu0 0
  %351 = vmatpush1.bf16.msra.mxu0 %v127
  %352 = vmatprep.subr.bf16.mxu0 0
  %353 = vmatpush1.bf16.msra.mxu0 %v126
  %354 = vmatprep.subr.bf16.mxu0 0
  %355 = vmatpush1.bf16.msra.mxu0 %v125
  %356 = vmatprep.subr.bf16.mxu0 0
  %357 = vmatpush1.bf16.msra.mxu0 %v124
  %358 = vmatprep.subr.bf16.mxu0 0
  %359 = vmatpush1.bf16.msra.mxu0 %v123
  %360 = vmatprep.subr.bf16.mxu0 0
  %361 = vmatpush1.bf16.msra.mxu0 %v122
  %362 = vmatprep.subr.bf16.mxu0 0
  %363 = vmatpush1.bf16.msra.mxu0 %v121
  %364 = vmatprep.subr.bf16.mxu0 0
  %365 = vmatpush2.bf16.msra.mxu0 0
  %366 = vmatprep.subr.bf16.mxu0 0
  %367 = vmatpush2.bf16.msra.mxu0 0
  %368 = vmatprep.subr.bf16.mxu0 0
  %369 = vmatpush2.bf16.msra.mxu0 0
  %370 = vmatprep.subr.bf16.mxu0 0
  %371 = vmatpush2.bf16.msra.mxu0 0
  %372 = vmatprep.subr.bf16.mxu0 0
  %373 = vmatpush2.bf16.msra.mxu0 0
  %374 = vmatprep.subr.bf16.mxu0 0
  %375 = vmatpush2.bf16.msra.mxu0 0
  %376 = vmatprep.subr.bf16.mxu0 0
  %377 = vmatpush2.bf16.msra.mxu0 0
  %378 = vmatprep.subr.bf16.mxu0 0
  %379 = vmatpush2.bf16.msra.mxu0 0
  %380 = vmatprep.mubr.bf16.mxu0 0
  %381 = vmatmul.mubr.bf16.gmra.mxu0 %v304
  %v382 = vpop.f32.mrf.mxu0
  %v383 = vadd.f32 %v343, %v382
  %v384 = vpop.f32.mrf.mxu0
  %v385 = vpop.f32.mrf.mxu0
  %v386 = vpop.f32.mrf.mxu0
  %387 = vdwg.mxu0
  %v388 = vmax.f32 %v383, 1e-12
  %v389 = vmul.f32 %v212, %v212
  %v390 = vmul.f32 %v389, 4.0
  %v391 = vmul.f32 %v302, %v388
  %v392 = vrcp.pop %v391
  %v393 = vmul.f32 %v390, %v392
  %v394 = vsub.f32 %v393, 1.0
  %v395 = vmax.f32 %v394, -1.0001
  %v396 = vmin.f32 %v395, 3.0001
  %v397 = vsub.f32 %v396, 1.0
  %v398 = vmul.f32 %v397, 0.5
  %vm399 = vcmp.gt.f32.partialorder %v398, 0.9961947
  %v400 = vsel %vm399, 1.0, 0.0
  %v401 = vld [vmem:[%s3] sm:$0xff]
  %v402 = vadd.f32 %v398, 0.0
  %v403 = vadd.f32 %v401, %v402
  %404 = vst [vmem:[%s3] sm:$0xff] %v403
  %v405 = vld [vmem:[%s4] sm:$0xff]
  %v406 = vadd.f32 %v83, 0.0
  %v407 = vadd.f32 %v405, %v406
  %408 = vst [vmem:[%s4] sm:$0xff] %v407
  %v409 = vld [vmem:[%s5] sm:$0xff]
  %v410 = vadd.f32 %v400, 0.0
  %v411 = vadd.f32 %v409, %v410
  %412 = vst [vmem:[%s5] sm:$0xff] %v411
  // Predicated region
  $region18: #{quat_loss.1} parent=0 // pred_check
    _
  $region19: #{quat_loss.1} parent=0 // pred_check_branch
    %414 = sbr.rel (0) target = $region21
  $region20: #{quat_loss.1} parent=0 // pred_region
    _
  $region21: #{quat_loss.1} parent=0 // pred_fallthru
    _
  // Predicated region
  $region22: #{quat_loss.1} parent=0 // pred_check
    _
  $region23: #{quat_loss.1} parent=0 // pred_check_branch
    %416 = sbr.rel (0) target = $region25
  $region24: #{quat_loss.1} parent=0 // pred_region
    _
  $region25: #{quat_loss.1} parent=0 // pred_fallthru
    _
  // Predicated region
  $region26: #{quat_loss.1} parent=0 // pred_check
    _
  $region27: #{quat_loss.1} parent=0 // pred_check_branch
    %418 = sbr.rel (0) target = $region29
  $region28: #{quat_loss.1} parent=0 // pred_region
    _
  $region29: #{quat_loss.1} parent=0 // pred_fallthru
    _
  // Predicated region
  $region30: #{quat_loss.1} parent=0 // pred_check
    _
  $region31: #{quat_loss.1} parent=0 // pred_check_branch
    %420 = sbr.rel (0) target = $region33
  $region32: #{quat_loss.1} parent=0 // pred_region
    _
  $region33: #{quat_loss.1} parent=0 // pred_fallthru
    _
  // Predicated region
  $region34: #{quat_loss.1} parent=0 // pred_check
    _
  $region35: #{quat_loss.1} parent=0 // pred_check_branch
    %422 = sbr.rel (0) target = $region37
  $region36: #{quat_loss.1} parent=0 // pred_region
    _
  $region37: #{quat_loss.1} parent=0 // pred_fallthru
    _
  // Predicated region
  $region38: #{quat_loss.1} parent=0 // pred_check
    _
  $region39: #{quat_loss.1} parent=0 // pred_check_branch
    %424 = sbr.rel (0) target = $region41
  $region40: #{quat_loss.1} parent=0 // pred_region
    _
  $region41: #{quat_loss.1} parent=0 // pred_fallthru
    _

</llo_original>
